<compile_context>
chip_gen: v7x
topology: tpu7x:2x2x1
jax: 0.10.0
libtpu: 0.0.40
codegen_flags: <defaults>
</compile_context>

<pallas_src>
import jax
import jax.numpy as jnp
from jax import lax
from jax.experimental import pallas as pl
from jax.experimental.pallas import tpu as pltpu

_LANE = 128


def _round_up(x: int, m: int) -> int:
    return (x + m - 1) // m * m


def _cdiv(a: int, b: int) -> int:
    return (a + b - 1) // b


def _sublane_for(itemsize: int) -> int:
    # Native sublane packing: (8,128) fp32, (16,128) bf16, (32,128) int8/fp8.
    return {1: 32, 2: 16}.get(itemsize, 8)


def _vmem_budget():
    """(tile_data_budget_bytes, vmem_limit_bytes) from this chip's VMEM."""
    try:
        cap = int(pltpu.get_tpu_info().vmem_capacity_bytes)
    except Exception:
        cap = 64 * 1024 * 1024  # conservative fallback: v7x per-TC VMEM
    tile_budget = int(cap * 0.6)                       # scales with the chip
    vmem_limit = min(int(cap * 0.8), 100 * 1024 * 1024)
    return tile_budget, vmem_limit


def _num_tensorcores() -> int:
    """Best-effort TensorCore-per-chip count (1 on v5e/v6e, 2 on v7x)."""
    try:
        info = pltpu.get_tpu_info()
        for name in ("num_cores", "num_tensorcores", "tensorcores_per_chip",
                     "cores_per_chip", "num_cores_per_chip"):
            v = getattr(info, name, None)
            if isinstance(v, int) and v > 0:
                return v
    except Exception:
        pass
    return 1


# --------------------------------------------------------------------------
# Single-pass kernel: whole row (h*w) in one block, softmax along lanes.
# --------------------------------------------------------------------------
def _softmax_rows_kernel(x_ref, o_ref):
    x = x_ref[...].astype(jnp.float32)
    m = jnp.max(x, axis=-1, keepdims=True)
    e = jnp.exp(x - m)
    s = jnp.sum(e, axis=-1, keepdims=True)
    # Exact reciprocal keeps rows summing to 1 at fp32 precision; the divide
    # is hidden behind HBM DMA since the kernel is memory-bound.
    o_ref[...] = (e * pl.reciprocal(s, approx=False)).astype(o_ref.dtype)


# --------------------------------------------------------------------------
# Two-pass fallback for extremely wide rows (row doesn't fit VMEM budget).
# --------------------------------------------------------------------------
def _softmax_two_pass(x2d, dtype, itemsize, sublane, tile_budget, vmem_limit,
                      chunk_override=None):
    rows, hw = x2d.shape

    row_tile = min(_round_up(rows, sublane), 8 * sublane)
    if row_tile >= rows:
        row_tile = rows
    per_elem = 4 * itemsize + 8            # dbl-buffered in/out + fp32 temps
    chunk = (tile_budget // max(per_elem * row_tile, 1)) // _LANE * _LANE
    chunk = max(_LANE, chunk)
    if chunk_override is not None:
        chunk = max(_LANE, (int(chunk_override) // _LANE) * _LANE)
    if chunk >= hw:
        chunk = hw                         # full-extent last dim is legal
    n_chunks = _cdiv(hw, chunk)
    row_blocks = _cdiv(rows, row_tile)

    def stats_kernel(x_ref, m_ref, l_ref, m_sc, l_sc):
        k = pl.program_id(1)

        @pl.when(k == 0)
        def _():
            m_sc[...] = jnp.full_like(m_sc, -jnp.inf)
            l_sc[...] = jnp.zeros_like(l_sc)

        x = x_ref[...].astype(jnp.float32)
        col = k * chunk + lax.broadcasted_iota(jnp.int32, x.shape, 1)
        x = jnp.where(col < hw, x, -jnp.inf)   # mask lane overhang of last chunk
        m_prev = m_sc[...]
        m_new = jnp.maximum(m_prev, jnp.max(x, axis=-1, keepdims=True))
        alpha = jnp.exp(m_prev - m_new)
        l_sc[...] = alpha * l_sc[...] + jnp.sum(jnp.exp(x - m_new),
                                                axis=-1, keepdims=True)
        m_sc[...] = m_new

        @pl.when(k == pl.num_programs(1) - 1)
        def _():
            m_ref[...] = m_sc[...]
            l_ref[...] = l_sc[...]

    m_arr, l_arr = pl.pallas_call(
        stats_kernel,
        out_shape=(jax.ShapeDtypeStruct((rows, 1), jnp.float32),
                   jax.ShapeDtypeStruct((rows, 1), jnp.float32)),
        grid_spec=pltpu.PrefetchScalarGridSpec(
            num_scalar_prefetch=0,
            grid=(row_blocks, n_chunks),
            in_specs=[pl.BlockSpec((row_tile, chunk), lambda i, k: (i, k))],
            out_specs=(pl.BlockSpec((row_tile, 1), lambda i, k: (i, 0)),
                       pl.BlockSpec((row_tile, 1), lambda i, k: (i, 0))),
            scratch_shapes=[pltpu.VMEM((row_tile, 1), jnp.float32),
                            pltpu.VMEM((row_tile, 1), jnp.float32)],
        ),
        compiler_params=pltpu.CompilerParams(
            dimension_semantics=("parallel", "arbitrary"),
            vmem_limit_bytes=vmem_limit,
        ),
    )(x2d)

    def apply_kernel(x_ref, m_ref, l_ref, o_ref):
        x = x_ref[...].astype(jnp.float32)
        e = jnp.exp(x - m_ref[...])
        o_ref[...] = (e * pl.reciprocal(l_ref[...], approx=False)).astype(o_ref.dtype)

    out2d = pl.pallas_call(
        apply_kernel,
        out_shape=jax.ShapeDtypeStruct((rows, hw), dtype),
        grid_spec=pltpu.PrefetchScalarGridSpec(
            num_scalar_prefetch=0,
            grid=(row_blocks, n_chunks),
            in_specs=[pl.BlockSpec((row_tile, chunk), lambda i, k: (i, k)),
                      pl.BlockSpec((row_tile, 1), lambda i, k: (i, 0)),
                      pl.BlockSpec((row_tile, 1), lambda i, k: (i, 0))],
            out_specs=pl.BlockSpec((row_tile, chunk), lambda i, k: (i, k)),
        ),
        compiler_params=pltpu.CompilerParams(
            dimension_semantics=("parallel", "parallel"),
            vmem_limit_bytes=vmem_limit,
        ),
    )(x2d, m_arr, l_arr)
    return out2d


# --------------------------------------------------------------------------
# Public wrapper: Pallas equivalent of ChannelNorm.forward (NCHW input).
# --------------------------------------------------------------------------
def channel_norm(featmap: jax.Array, *, force_two_pass: bool = False,
                 two_pass_chunk=None) -> jax.Array:
    n, c, h, w = featmap.shape
    hw = h * w
    rows = n * c
    dtype = featmap.dtype            # preserve caller dtype; fp32 math inside
    itemsize = jnp.dtype(dtype).itemsize
    sublane = _sublane_for(itemsize)
    tile_budget, vmem_limit = _vmem_budget()
    num_tc = _num_tensorcores()

    x2d = featmap.reshape(rows, hw)  # free reshape; no pad / copy passes

    # Per-row VMEM footprint (lane-padded layout): 2x double-buffered in/out
    # blocks + fp32 in-kernel intermediates.
    hw_lanes = _round_up(hw, _LANE)
    bytes_per_row = hw_lanes * (4 * itemsize + 2 * 4)
    max_tile_rows = (tile_budget // bytes_per_row) // sublane * sublane

    if force_two_pass or max_tile_rows < sublane:
        out2d = _softmax_two_pass(x2d, dtype, itemsize, sublane,
                                  tile_budget, vmem_limit,
                                  chunk_override=two_pass_chunk)
        return out2d.reshape(n, c, hw)

    # ---- single-pass row tiling --------------------------------------------
    if rows <= max_tile_rows and (num_tc <= 1 or rows <= sublane):
        row_tile, grid = rows, 1     # one full block (single-TC chips)
    else:
        steps = _cdiv(rows, max_tile_rows)
        if num_tc > 1:
            steps = _round_up(max(steps, num_tc), num_tc)
        row_tile = _round_up(_cdiv(rows, steps), sublane)
        grid = _cdiv(rows, row_tile)
        # Keep the step count a multiple of the TC count where feasible so
        # megacore sharding stays balanced.
        for _ in range(3):
            if num_tc <= 1 or grid <= 1 or grid % num_tc == 0:
                break
            steps = _round_up(grid, num_tc)
            row_tile = _round_up(_cdiv(rows, steps), sublane)
            grid = _cdiv(rows, row_tile)
        if row_tile >= rows:
            row_tile, grid = rows, 1

    out2d = pl.pallas_call(
        _softmax_rows_kernel,
        out_shape=jax.ShapeDtypeStruct((rows, hw), dtype),
        grid_spec=pltpu.PrefetchScalarGridSpec(
            num_scalar_prefetch=0,
            grid=(grid,),
            in_specs=[pl.BlockSpec((row_tile, hw), lambda i: (i, 0))],
            out_specs=pl.BlockSpec((row_tile, hw), lambda i: (i, 0)),
        ),
        compiler_params=pltpu.CompilerParams(
            dimension_semantics=("parallel",),
            vmem_limit_bytes=vmem_limit,
        ),
    )(x2d)
    return out2d.reshape(n, c, hw)


def channel_norm_ref(featmap: jax.Array) -> jax.Array:
    n, c, h, w = featmap.shape
    return jax.nn.softmax(featmap.reshape(n, c, h * w), axis=-1)


if __name__ == "__main__":
    key = jax.random.PRNGKey(0)
    k1, k2, k3, k4 = jax.random.split(key, 4)

    # 1) Aligned case (hw multiple of 128), fp32.
    x = jax.random.normal(k1, (2, 4, 16, 16), dtype=jnp.float32)
    out = jax.block_until_ready(channel_norm(x))
    ref = channel_norm_ref(x)
    assert out.shape == (2, 4, 256), out.shape
    assert jnp.allclose(out, ref, atol=1e-5, rtol=1e-5), "mismatch (aligned fp32)"

    # 2) Unaligned case (hw = 49, rows = 6): full-extent blocks, no pads.
    x2 = jax.random.normal(k2, (2, 3, 7, 7), dtype=jnp.float32)
    out2 = jax.block_until_ready(channel_norm(x2))
    ref2 = channel_norm_ref(x2)
    assert out2.shape == (2, 3, 49), out2.shape
    assert jnp.allclose(out2, ref2, atol=1e-5, rtol=1e-5), "mismatch (unaligned fp32)"

    # 3) bf16 in -> bf16 out (exercises 16-row sublane packing path).
    x3 = jax.random.normal(k3, (2, 4, 9, 9), dtype=jnp.bfloat16)
    out3 = jax.block_until_ready(channel_norm(x3))
    ref3 = channel_norm_ref(x3)
    assert out3.shape == (2, 4, 81), out3.shape
    assert jnp.allclose(out3.astype(jnp.float32), ref3.astype(jnp.float32),
                        atol=2e-2, rtol=2e-2), "mismatch (bf16)"

    # 4) Two-pass online-softmax fallback (forced, small chunk -> multi-chunk
    #    accumulation + lane-overhang masking), normally only hit for huge h*w.
    x4 = jax.random.normal(k4, (1, 8, 20, 20), dtype=jnp.float32)
    out4 = jax.block_until_ready(
        channel_norm(x4, force_two_pass=True, two_pass_chunk=128))
    ref4 = channel_norm_ref(x4)
    assert out4.shape == (1, 8, 400), out4.shape
    assert jnp.allclose(out4, ref4, atol=1e-5, rtol=1e-5), "mismatch (two-pass)"

    print("KERNEL_OK")
</pallas_src>

<mosaic_0001>
module attributes {stable_mosaic.version = 11 : i64} {
  func.func @_softmax_rows_kernel(%arg0: i32, %arg1: memref<8x256xf32, #tpu.memory_space<vmem>>, %arg2: memref<8x256xf32, #tpu.memory_space<vmem>>) attributes {dimension_semantics = [#tpu.dimension_semantics<parallel>], iteration_bounds = array<i64: 1>, scalar_prefetch = 0 : i64, scratch_operands = 0 : i64, tpu.core_type = #tpu.core_type<tc>, window_params = [{transform_indices = @transform_0, window_bounds = array<i64: 8, 256>}, {transform_indices = @transform_1, window_bounds = array<i64: 8, 256>}]} {
    %c0 = arith.constant 0 : index
    %c0_0 = arith.constant 0 : index
    %0 = vector.load %arg1[%c0, %c0_0] : memref<8x256xf32, #tpu.memory_space<vmem>>, vector<8x256xf32>
    %cst = arith.constant dense<0xFF800000> : vector<8xf32>
    %1 = vector.multi_reduction <maximumf>, %0, %cst [1] : vector<8x256xf32> to vector<8xf32>
    %2 = vector.shape_cast %1 : vector<8xf32> to vector<8x1xf32>
    %3 = vector.broadcast %2 : vector<8x1xf32> to vector<8x256xf32>
    %4 = arith.subf %0, %3 : vector<8x256xf32>
    %5 = math.exp %4 : vector<8x256xf32>
    %cst_1 = arith.constant dense<0.000000e+00> : vector<8xf32>
    %6 = vector.multi_reduction <add>, %5, %cst_1 [1] : vector<8x256xf32> to vector<8xf32>
    %7 = vector.shape_cast %6 : vector<8xf32> to vector<8x1xf32>
    %8 = tpu.reciprocal %7 : vector<8x1xf32> -> vector<8x1xf32>
    %9 = vector.broadcast %8 : vector<8x1xf32> to vector<8x256xf32>
    %10 = arith.mulf %5, %9 : vector<8x256xf32>
    %c0_2 = arith.constant 0 : index
    %c0_3 = arith.constant 0 : index
    %11 = vector.load %arg2[%c0_2, %c0_3] : memref<8x256xf32, #tpu.memory_space<vmem>>, vector<8x256xf32>
    tpu.vector_store %arg2[%c0_2, %c0_3], %10 {strides = array<i32>} : memref<8x256xf32, #tpu.memory_space<vmem>>, vector<8x256xf32>,
    return
  }
  func.func @transform_0(%arg0: i32) -> (i32, i32) {
    %c0_i32 = arith.constant 0 : i32
    %c0_i32_0 = arith.constant 0 : i32
    return %arg0, %c0_i32 : i32, i32
  }
  func.func @transform_1(%arg0: i32) -> (i32, i32) {
    %c0_i32 = arith.constant 0 : i32
    %c0_i32_0 = arith.constant 0 : i32
    return %arg0, %c0_i32 : i32, i32
  }
}

</mosaic_0001>

<llo_original>
// kernel: tpu_custom_call.1
$region0: #{tpu_custom_call.1}
  #allocation0 [shape = 'u32[]', space=smem, size = 0x4, offset = 0x4, fixed_abs, tag = 'smem constant byte address 0x4 - core index']
  #allocation1 [shape = 'u32[144,128]{1,0:T(1,128)}', space=vmem, size = 0x12000, scoped, tag = 'internal scratch']
  %s0 = inlined_call_operand.hbm [shape: f32[8,256], index: 0, kind: input, shape index: {}]
  %s1 = inlined_call_operand.hbm [shape: f32[8,256], index: 1, kind: output, shape index: {}]
  %s2 = sld [smem:[#allocation0]]
  $region18: #{tpu_custom_call.1} parent=0
    _
  %s4 = ssub.s32 1, %s2
  %s5 = scalar_select 0, %s4, %s2
  $region1: #{tpu_custom_call.1} parent=0
    #allocation2 [shape = 'u8[8192]{0}', space=vmem, size = 0x2000, scoped, tag = 'input window, operand 0, single buffered']
    #allocation3 [shape = 's32[1]{0}', space=sflag, size = 0x4, scoped, tag = 'scoped memory for tpu_custom_call.1']
    #allocation4 [shape = 's32[1]{0}', space=sflag, size = 0x4, scoped, tag = 'scoped memory for tpu_custom_call.1']
    #allocation5 [shape = 'u8[8192]{0}', space=vmem, size = 0x2000, scoped, tag = 'output window, operand 0, single buffered']
    %6 = vsyncpa [#allocation3], 0
    %7 = vsyncpa [#allocation4], 0
    // Predicated region
    $region2: #{tpu_custom_call.1} parent=1 // pred_check
      _
    $region3: #{tpu_custom_call.1} parent=1 // pred_check_branch
      %9 = sbr.rel (0) target = $region5
    $region4: #{tpu_custom_call.1} parent=1 // pred_region
      %s11 = ssub.s32 256, 256
      %12 = vsyncadd [#allocation3], %s11
      %s14 = sshll.u32 [#allocation2], 4
      %s15 = int_to_ptr.vmem [resolvable:$true] %s14
      %17 = dma.hbm_to_vmem [thread:$0]  %s0, 256, %s15, [#allocation3]
    $region5: #{tpu_custom_call.1} parent=1 // pred_fallthru
      _
    // Predicated region
    $region6: #{tpu_custom_call.1} parent=1 // pred_check
      _
    $region7: #{tpu_custom_call.1} parent=1 // pred_check_branch
      %19 = sbr.rel (0) target = $region9
    $region8: #{tpu_custom_call.1} parent=1 // pred_region
      %20 = dma.done [#allocation3], 256
    $region9: #{tpu_custom_call.1} parent=1 // pred_fallthru
      _
    %v21 = vld [vmem:[#allocation2] sm:$0xff]
    %v22 = vld [vmem:[#allocation2 + $0x8] sm:$0xff]
    %v23 = vmax.f32 %v21, %v22
    %24 = vmax.xlane.f32.xlu0 %v23
    %v25 = vpop.xlane.xlu0 %24
    %v26 = vsub.f32 %v21, %v25
    %v27 = vsub.f32 %v22, %v25
    %v28 = vmul.f32 %v26, 1.442695
    %v29 = vpow.pop %v28
    %v30 = vmul.f32 %v27, 1.442695
    %v31 = vpow.pop %v30
    %v32 = vadd.f32 %v29, %v31
    %33 = vadd.xlane.f32.xlu0 %v32
    %v34 = vpop.xlane.xlu0 %33
    %v35 = vrcp.pop %v34
    %v36 = vmul.f32 %v29, %v35
    %v37 = vmul.f32 %v31, %v35
    %38 = vst [vmem:[#allocation5] sm:$0xff] %v36
    %39 = vst [vmem:[#allocation5 + $0x8] sm:$0xff] %v37
    // Predicated region
    $region10: #{tpu_custom_call.1} parent=1 // pred_check
      _
    $region11: #{tpu_custom_call.1} parent=1 // pred_check_branch
      %41 = sbr.rel (0) target = $region13
    $region12: #{tpu_custom_call.1} parent=1 // pred_region
      %s43 = ssub.s32 256, 256
      %44 = vsyncadd [#allocation4], %s43
      %s46 = sshll.u32 [#allocation5], 4
      %s47 = int_to_ptr.vmem [resolvable:$true] %s46
      %49 = dma.vmem_to_hbm [thread:$0]  %s47, 256, %s1, [#allocation4]
    $region13: #{tpu_custom_call.1} parent=1 // pred_fallthru
      _
    // Predicated region
    $region14: #{tpu_custom_call.1} parent=1 // pred_check
      _
    $region15: #{tpu_custom_call.1} parent=1 // pred_check_branch
      %51 = sbr.rel (0) target = $region17
    $region16: #{tpu_custom_call.1} parent=1 // pred_region
      %52 = dma.done [#allocation4], 256
    $region17: #{tpu_custom_call.1} parent=1 // pred_fallthru
      _
    %53 = vsyncpa [#allocation3], 1
    %54 = vsyncpa [#allocation4], 1

</llo_original>
